<compile_context>
chip_gen: v6e
topology: v6e:2x2x1
jax: 0.10.0
libtpu: 0.0.40
codegen_flags: <defaults>
</compile_context>

<pallas_src>
import jax
import jax.numpy as jnp
from jax.experimental import pallas as pl
from jax.experimental.pallas import tpu as pltpu

EPS = 1e-5  # PyTorch nn.LayerNorm default

# Conservative per-pipeline VMEM budget for tile sizing (fits every generation,
# including v7x's 64 MiB physical VMEM with headroom for double-buffering and
# f32 temporaries inside the body).
_VMEM_TILE_BUDGET = 24 << 20  # 24 MiB


def _add_norm_kernel(res_ref, out_ref, gamma_ref, beta_ref, y_ref):
    # Fused add + LayerNorm over the last dim of the (block_rows, hidden) tile.
    x = res_ref[...].astype(jnp.float32) + out_ref[...].astype(jnp.float32)
    mean = jnp.mean(x, axis=-1, keepdims=True)
    xc = x - mean
    var = jnp.mean(xc * xc, axis=-1, keepdims=True)  # biased variance (PyTorch LN)
    inv = jax.lax.rsqrt(var + EPS)
    # gamma/beta are already f32 (pre-cast on host), shape (1, hidden).
    y = xc * inv * gamma_ref[...] + beta_ref[...]
    y_ref[...] = y.astype(y_ref.dtype)


def _choose_block_rows(rows, hidden, dtype_bytes):
    """Largest row tile (multiple of 8, <=1024) that fits the VMEM budget.

    Budget model: 2 inputs + 1 output, each double-buffered (~6x tile bytes in
    I/O dtype) plus ~4 f32 temporaries of the tile inside the body.
    """
    per_row = hidden * (6 * dtype_bytes + 4 * 4)
    target = _VMEM_TILE_BUDGET // max(per_row, 1)
    target = max(8, min(1024, (target // 8) * 8))
    if rows <= target:
        # Small input: single block covering all rows (rows equals full dim,
        # so the (8,128) divisibility rule is satisfied).
        return rows
    # Prefer a divisor of `rows` (multiple of 8) so there is no partial block;
    # otherwise fall back to `target` with a cdiv grid (Pallas masks the
    # partial last block on store).
    for cand in range(target, 7, -8):
        if rows % cand == 0:
            return cand
    return target


def add_norm(residual, out, gamma, beta, *, block_rows=None):
    assert residual.shape == out.shape
    hidden = residual.shape[-1]
    assert gamma.shape == (hidden,) and beta.shape == (hidden,)

    orig_shape = residual.shape
    res2d = residual.reshape(-1, hidden)
    out2d = out.reshape(-1, hidden)
    rows = res2d.shape[0]

    dtype_bytes = jnp.dtype(residual.dtype).itemsize
    if block_rows is None:
        block_rows = _choose_block_rows(rows, hidden, dtype_bytes)
    block_rows = min(block_rows, rows)
    grid = (pl.cdiv(rows, block_rows),)

    # Raise the scoped VMEM limit so the larger tiles compile; leave headroom
    # but stay well under v7x's 64 MiB physical VMEM.
    tile_bytes = block_rows * hidden * dtype_bytes
    f32_tile_bytes = block_rows * hidden * 4
    needed = 6 * tile_bytes + 4 * f32_tile_bytes + 4 * hidden * 4
    vmem_limit = int(min(max(needed + (8 << 20), 32 << 20), 56 << 20))

    # Pre-cast LayerNorm params to f32 once on the host (no per-step astype).
    gamma2d = gamma.astype(jnp.float32).reshape(1, hidden)
    beta2d = beta.astype(jnp.float32).reshape(1, hidden)

    y2d = pl.pallas_call(
        _add_norm_kernel,
        out_shape=jax.ShapeDtypeStruct((rows, hidden), residual.dtype),
        grid_spec=pltpu.PrefetchScalarGridSpec(
            num_scalar_prefetch=0,
            grid=grid,
            in_specs=[
                pl.BlockSpec((block_rows, hidden), lambda i: (i, 0)),
                pl.BlockSpec((block_rows, hidden), lambda i: (i, 0)),
                pl.BlockSpec((1, hidden), lambda i: (0, 0)),
                pl.BlockSpec((1, hidden), lambda i: (0, 0)),
            ],
            out_specs=pl.BlockSpec((block_rows, hidden), lambda i: (i, 0)),
        ),
        compiler_params=pltpu.CompilerParams(
            dimension_semantics=("parallel",),
            vmem_limit_bytes=vmem_limit,
        ),
    )(res2d, out2d, gamma2d, beta2d)

    return y2d.reshape(orig_shape)


def _ref_add_norm(residual, out, gamma, beta):
    x = (residual + out).astype(jnp.float32)
    mean = jnp.mean(x, axis=-1, keepdims=True)
    var = jnp.mean((x - mean) ** 2, axis=-1, keepdims=True)
    y = (x - mean) / jnp.sqrt(var + EPS) * gamma.astype(jnp.float32) + beta.astype(jnp.float32)
    return y.astype(residual.dtype)


if __name__ == "__main__":
    key = jax.random.PRNGKey(0)
    k1, k2, k3, k4 = jax.random.split(key, 4)

    # Small example consistent with the module: [batch, seq, hidden].
    batch, seq, hidden = 2, 8, 32
    residual = jax.random.normal(k1, (batch, seq, hidden), dtype=jnp.float32)
    out = jax.random.normal(k2, (batch, seq, hidden), dtype=jnp.float32)

    # PyTorch default LayerNorm init: weight=1, bias=0.
    gamma = jnp.ones((hidden,), dtype=jnp.float32)
    beta = jnp.zeros((hidden,), dtype=jnp.float32)

    y = add_norm(residual, out, gamma, beta)
    y = jax.block_until_ready(y)
    ref = _ref_add_norm(residual, out, gamma, beta)
    assert jnp.allclose(y, ref, atol=1e-5, rtol=1e-5), "mismatch vs reference (test 1)"

    # Second check: non-divisible row count with a forced small tile to
    # exercise the cdiv grid + masked partial last block path.
    b2, s2, h2 = 3, 7, 128  # rows = 21, block_rows = 8 -> grid of 3, last block partial
    res2 = jax.random.normal(k3, (b2, s2, h2), dtype=jnp.float32)
    out2 = jax.random.normal(k4, (b2, s2, h2), dtype=jnp.float32)
    g2 = jnp.linspace(0.5, 1.5, h2, dtype=jnp.float32)
    bt2 = jnp.linspace(-0.1, 0.1, h2, dtype=jnp.float32)
    y2 = add_norm(res2, out2, g2, bt2, block_rows=8)
    y2 = jax.block_until_ready(y2)
    ref2 = _ref_add_norm(res2, out2, g2, bt2)
    assert jnp.allclose(y2, ref2, atol=1e-5, rtol=1e-5), "mismatch vs reference (test 2)"

    print("KERNEL_OK")
</pallas_src>

<mosaic_0001>
module attributes {stable_mosaic.version = 11 : i64} {
  func.func @_add_norm_kernel(%arg0: i32, %arg1: memref<16x32xf32, #tpu.memory_space<vmem>>, %arg2: memref<16x32xf32, #tpu.memory_space<vmem>>, %arg3: memref<1x32xf32, #tpu.memory_space<vmem>>, %arg4: memref<1x32xf32, #tpu.memory_space<vmem>>, %arg5: memref<16x32xf32, #tpu.memory_space<vmem>>) attributes {dimension_semantics = [#tpu.dimension_semantics<parallel>], iteration_bounds = array<i64: 1>, scalar_prefetch = 0 : i64, scratch_operands = 0 : i64, tpu.core_type = #tpu.core_type<tc>, window_params = [{transform_indices = @transform_0, window_bounds = array<i64: 16, 32>}, {transform_indices = @transform_1, window_bounds = array<i64: 16, 32>}, {pipeline_mode = #tpu.pipeline_mode<synchronous>, transform_indices = @transform_2, window_bounds = array<i64: 1, 32>}, {pipeline_mode = #tpu.pipeline_mode<synchronous>, transform_indices = @transform_3, window_bounds = array<i64: 1, 32>}, {transform_indices = @transform_4, window_bounds = array<i64: 16, 32>}]} {
    %c0 = arith.constant 0 : index
    %c0_0 = arith.constant 0 : index
    %0 = vector.load %arg1[%c0, %c0_0] : memref<16x32xf32, #tpu.memory_space<vmem>>, vector<16x32xf32>
    %c0_1 = arith.constant 0 : index
    %c0_2 = arith.constant 0 : index
    %1 = vector.load %arg2[%c0_1, %c0_2] : memref<16x32xf32, #tpu.memory_space<vmem>>, vector<16x32xf32>
    %2 = arith.addf %0, %1 : vector<16x32xf32>
    %cst = arith.constant dense<0.000000e+00> : vector<16xf32>
    %3 = vector.multi_reduction <add>, %2, %cst [1] : vector<16x32xf32> to vector<16xf32>
    %4 = vector.shape_cast %3 : vector<16xf32> to vector<16x1xf32>
    %cst_3 = arith.constant 3.200000e+01 : f32
    %5 = vector.broadcast %cst_3 : f32 to vector<16x1xf32>
    %6 = arith.divf %4, %5 : vector<16x1xf32>
    %7 = vector.broadcast %6 : vector<16x1xf32> to vector<16x32xf32>
    %8 = arith.subf %2, %7 : vector<16x32xf32>
    %9 = arith.mulf %8, %8 : vector<16x32xf32>
    %cst_4 = arith.constant dense<0.000000e+00> : vector<16xf32>
    %10 = vector.multi_reduction <add>, %9, %cst_4 [1] : vector<16x32xf32> to vector<16xf32>
    %11 = vector.shape_cast %10 : vector<16xf32> to vector<16x1xf32>
    %cst_5 = arith.constant 3.200000e+01 : f32
    %12 = vector.broadcast %cst_5 : f32 to vector<16x1xf32>
    %13 = arith.divf %11, %12 : vector<16x1xf32>
    %cst_6 = arith.constant 9.99999974E-6 : f32
    %14 = vector.broadcast %cst_6 : f32 to vector<16x1xf32>
    %15 = arith.addf %13, %14 : vector<16x1xf32>
    %16 = math.rsqrt %15 : vector<16x1xf32>
    %17 = vector.broadcast %16 : vector<16x1xf32> to vector<16x32xf32>
    %18 = arith.mulf %8, %17 : vector<16x32xf32>
    %c0_7 = arith.constant 0 : index
    %c0_8 = arith.constant 0 : index
    %19 = vector.load %arg3[%c0_7, %c0_8] : memref<1x32xf32, #tpu.memory_space<vmem>>, vector<1x32xf32>
    %20 = vector.broadcast %19 : vector<1x32xf32> to vector<16x32xf32>
    %21 = arith.mulf %18, %20 : vector<16x32xf32>
    %c0_9 = arith.constant 0 : index
    %c0_10 = arith.constant 0 : index
    %22 = vector.load %arg4[%c0_9, %c0_10] : memref<1x32xf32, #tpu.memory_space<vmem>>, vector<1x32xf32>
    %23 = vector.broadcast %22 : vector<1x32xf32> to vector<16x32xf32>
    %24 = arith.addf %21, %23 : vector<16x32xf32>
    %c0_11 = arith.constant 0 : index
    %c0_12 = arith.constant 0 : index
    %25 = vector.load %arg5[%c0_11, %c0_12] : memref<16x32xf32, #tpu.memory_space<vmem>>, vector<16x32xf32>
    tpu.vector_store %arg5[%c0_11, %c0_12], %24 {strides = array<i32>} : memref<16x32xf32, #tpu.memory_space<vmem>>, vector<16x32xf32>,
    return
  }
  func.func @transform_0(%arg0: i32) -> (i32, i32) {
    %c0_i32 = arith.constant 0 : i32
    %c0_i32_0 = arith.constant 0 : i32
    return %arg0, %c0_i32 : i32, i32
  }
  func.func @transform_1(%arg0: i32) -> (i32, i32) {
    %c0_i32 = arith.constant 0 : i32
    %c0_i32_0 = arith.constant 0 : i32
    return %arg0, %c0_i32 : i32, i32
  }
  func.func @transform_2(%arg0: i32) -> (i32, i32) {
    %c0_i32 = arith.constant 0 : i32
    %c0_i32_0 = arith.constant 0 : i32
    %c0_i32_1 = arith.constant 0 : i32
    return %c0_i32, %c0_i32_0 : i32, i32
  }
  func.func @transform_3(%arg0: i32) -> (i32, i32) {
    %c0_i32 = arith.constant 0 : i32
    %c0_i32_0 = arith.constant 0 : i32
    %c0_i32_1 = arith.constant 0 : i32
    return %c0_i32, %c0_i32_0 : i32, i32
  }
  func.func @transform_4(%arg0: i32) -> (i32, i32) {
    %c0_i32 = arith.constant 0 : i32
    %c0_i32_0 = arith.constant 0 : i32
    return %arg0, %c0_i32 : i32, i32
  }
}

</mosaic_0001>

<llo_original>
// kernel: tpu_custom_call.1
$region0: #{tpu_custom_call.1}
  #allocation0 [shape = 'u32[]', space=smem, size = 0x4, offset = 0x4, fixed_abs, tag = 'smem constant byte address 0x4 - core index']
  #allocation1 [shape = 'u32[144,128]{1,0:T(1,128)}', space=vmem, size = 0x12000, scoped, tag = 'internal scratch']
  %s0 = inlined_call_operand.hbm [shape: f32[16,32], index: 0, kind: input, shape index: {}]
  %s1 = inlined_call_operand.hbm [shape: f32[16,32], index: 1, kind: input, shape index: {}]
  %s2 = inlined_call_operand.vmem [shape: f32[1,32], index: 2, kind: input, shape index: {}]
  %s3 = inlined_call_operand.vmem [shape: f32[1,32], index: 3, kind: input, shape index: {}]
  %s4 = inlined_call_operand.hbm [shape: f32[16,32], index: 4, kind: output, shape index: {}]
  %s5 = sld [smem:[#allocation0]]
  $region34: #{tpu_custom_call.1} parent=0
    _
  %s7 = ssub.s32 1, %s5
  %s8 = scalar_select 0, %s7, %s5
  $region1: #{tpu_custom_call.1} parent=0
    #allocation2 [shape = 'u8[8192]{0}', space=vmem, size = 0x2000, scoped, tag = 'input window, operand 0, single buffered']
    #allocation3 [shape = 's32[1]{0}', space=sflag, size = 0x4, scoped, tag = 'scoped memory for tpu_custom_call.1']
    #allocation4 [shape = 's32[1]{0}', space=sflag, size = 0x4, scoped, tag = 'scoped memory for tpu_custom_call.1']
    #allocation5 [shape = 'u8[8192]{0}', space=vmem, size = 0x2000, scoped, tag = 'input window, operand 1, single buffered']
    #allocation6 [shape = 's32[1]{0}', space=sflag, size = 0x4, scoped, tag = 'scoped memory for tpu_custom_call.1']
    #allocation7 [shape = 'u8[8192]{0}', space=vmem, size = 0x2000, scoped, tag = 'output window, operand 0, single buffered']
    %9 = vsyncpa [#allocation3], 0
    %10 = vsyncpa [#allocation6], 0
    %11 = vsyncpa [#allocation4], 0
    // Predicated region
    $region2: #{tpu_custom_call.1} parent=1 // pred_check
      _
    $region3: #{tpu_custom_call.1} parent=1 // pred_check_branch
      %13 = sbr.rel (0) target = $region5
    $region4: #{tpu_custom_call.1} parent=1 // pred_region
      %s15 = ssub.s32 256, 256
      %16 = vsyncadd [#allocation3], %s15
      %s17 = sshll.u32 [#allocation2], 4
      %s18 = int_to_ptr.vmem [resolvable:$true] %s17
      %23 = dma.hbm_to_vmem [thread:$0]  %s0, 256, %s18, [#allocation3], 128, 128, 8
    $region5: #{tpu_custom_call.1} parent=1 // pred_fallthru
      _
    // Predicated region
    $region6: #{tpu_custom_call.1} parent=1 // pred_check
      _
    $region7: #{tpu_custom_call.1} parent=1 // pred_check_branch
      %25 = sbr.rel (0) target = $region9
    $region8: #{tpu_custom_call.1} parent=1 // pred_region
      %s27 = ssub.s32 256, 256
      %28 = vsyncadd [#allocation6], %s27
      %s29 = sshll.u32 [#allocation5], 4
      %s30 = int_to_ptr.vmem [resolvable:$true] %s29
      %35 = dma.hbm_to_vmem [thread:$0]  %s1, 256, %s30, [#allocation6], 128, 128, 8
    $region9: #{tpu_custom_call.1} parent=1 // pred_fallthru
      _
    // Predicated region
    $region10: #{tpu_custom_call.1} parent=1 // pred_check
      _
    $region11: #{tpu_custom_call.1} parent=1 // pred_check_branch
      %37 = sbr.rel (0) target = $region13
    $region12: #{tpu_custom_call.1} parent=1 // pred_region
      _
    $region13: #{tpu_custom_call.1} parent=1 // pred_fallthru
      _
    // Predicated region
    $region14: #{tpu_custom_call.1} parent=1 // pred_check
      _
    $region15: #{tpu_custom_call.1} parent=1 // pred_check_branch
      %39 = sbr.rel (0) target = $region17
    $region16: #{tpu_custom_call.1} parent=1 // pred_region
      _
    $region17: #{tpu_custom_call.1} parent=1 // pred_fallthru
      _
    // Predicated region
    $region18: #{tpu_custom_call.1} parent=1 // pred_check
      _
    $region19: #{tpu_custom_call.1} parent=1 // pred_check_branch
      %41 = sbr.rel (0) target = $region21
    $region20: #{tpu_custom_call.1} parent=1 // pred_region
      %42 = dma.done [#allocation3], 256
    $region21: #{tpu_custom_call.1} parent=1 // pred_fallthru
      _
    // Predicated region
    $region22: #{tpu_custom_call.1} parent=1 // pred_check
      _
    $region23: #{tpu_custom_call.1} parent=1 // pred_check_branch
      %44 = sbr.rel (0) target = $region25
    $region24: #{tpu_custom_call.1} parent=1 // pred_region
      %45 = dma.done [#allocation6], 256
    $region25: #{tpu_custom_call.1} parent=1 // pred_fallthru
      _
    %v46 = vld [vmem:[#allocation2] sm:$0xff]
    %v47 = vld [vmem:[#allocation2 + $0x8] sm:$0xff]
    %v48 = vld [vmem:[#allocation5] sm:$0xff]
    %v49 = vld [vmem:[#allocation5 + $0x8] sm:$0xff]
    %v50 = vadd.f32 %v46, %v48
    %v51 = vadd.f32 %v47, %v49
    %vm52 = vcmask 261120
    %v53 = vsel %vm52, %v50, 0.0
    %54 = vadd.xlane.f32.xlu0 %v53
    %v55 = vpop.xlane.xlu0 %54
    %v56 = vsel %vm52, %v51, 0.0
    %57 = vadd.xlane.f32.xlu0 %v56
    %v58 = vpop.xlane.xlu0 %57
    %v59 = vrcp.pop 32.0
    %v60 = vmul.f32 %v55, %v59
    %v61 = vmul.f32 %v58, %v59
    %v62 = vsub.f32 %v50, %v60
    %v63 = vsub.f32 %v51, %v61
    %v64 = vmul.f32 %v62, %v62
    %v65 = vmul.f32 %v63, %v63
    %v66 = vsel %vm52, %v64, 0.0
    %67 = vadd.xlane.f32.xlu0 %v66
    %v68 = vpop.xlane.xlu0 %67
    %v69 = vsel %vm52, %v65, 0.0
    %70 = vadd.xlane.f32.xlu0 %v69
    %v71 = vpop.xlane.xlu0 %70
    %v72 = vmul.f32 %v68, %v59
    %v73 = vmul.f32 %v71, %v59
    %v74 = vadd.f32 %v72, 1e-05
    %v75 = vadd.f32 %v73, 1e-05
    %v76 = vrsqrt.pop %v74
    %v77 = vrsqrt.pop %v75
    %v78 = vmul.f32 %v62, %v76
    %v79 = vmul.f32 %v63, %v77
    %v80 = vld [vmem:[%s2] sm:$0x1]
    %v82 = vlaneseq
    %v83 = vshrl.u32 %v82, 7
    %v84 = vsub.s32 0, %v83
    %v85 = vrot.slane %v80, %v84
    %v87 = vmul.f32 %v78, %v85
    %v88 = vmul.f32 %v79, %v85
    %v89 = vld [vmem:[%s3] sm:$0x1]
    %v91 = vlaneseq
    %v92 = vshrl.u32 %v91, 7
    %v93 = vsub.s32 0, %v92
    %v94 = vrot.slane %v89, %v93
    %v96 = vadd.f32 %v87, %v94
    %v97 = vadd.f32 %v88, %v94
    %98 = vst.msk [vmem:[#allocation7] sm:$0xff] %vm52, %v96
    %99 = vst.msk [vmem:[#allocation7 + $0x8] sm:$0xff] %vm52, %v97
    // Predicated region
    $region26: #{tpu_custom_call.1} parent=1 // pred_check
      _
    $region27: #{tpu_custom_call.1} parent=1 // pred_check_branch
      %101 = sbr.rel (0) target = $region29
    $region28: #{tpu_custom_call.1} parent=1 // pred_region
      %s103 = ssub.s32 256, 256
      %104 = vsyncadd [#allocation4], %s103
      %s105 = sshll.u32 [#allocation7], 4
      %s106 = int_to_ptr.vmem [resolvable:$true] %s105
      %111 = dma.vmem_to_hbm [thread:$0]  %s106, 256, %s4, [#allocation4], 128, 128, 8
    $region29: #{tpu_custom_call.1} parent=1 // pred_fallthru
      _
    // Predicated region
    $region30: #{tpu_custom_call.1} parent=1 // pred_check
      _
    $region31: #{tpu_custom_call.1} parent=1 // pred_check_branch
      %113 = sbr.rel (0) target = $region33
    $region32: #{tpu_custom_call.1} parent=1 // pred_region
      %114 = dma.done [#allocation4], 256
    $region33: #{tpu_custom_call.1} parent=1 // pred_fallthru
      _
    %115 = vsyncpa [#allocation3], 1
    %116 = vsyncpa [#allocation6], 1
    %117 = vsyncpa [#allocation4], 1

</llo_original>
